<compile_context>
chip_gen: v7x
topology: tpu7x:2x2x1
jax: 0.10.0
libtpu: 0.0.40
codegen_flags: <defaults>
</compile_context>

<pallas_src>
import functools
import numpy as np

import jax
import jax.numpy as jnp
from jax import lax
from jax.experimental import pallas as pl
from jax.experimental.pallas import tpu as pltpu

EPS = 1e-5          # nn.LayerNorm default eps
NEG = -1e30         # finite mask sentinel (avoids -inf -> NaN hazard)

# joint grouping / ordering constants from the PyTorch module
IDX_ARMS = [16, 18, 20, 17, 19, 21]
IDX_LEGS = [1, 4, 7, 10, 2, 5, 8, 11]
IDX_SPINE = [0, 3, 6, 9, 12, 13, 14, 15]
IDX_GLOBAL = [22]
NEW_ORDER = IDX_ARMS + IDX_LEGS + IDX_SPINE + IDX_GLOBAL
INV_ORDER = sorted(range(len(NEW_ORDER)), key=lambda k: NEW_ORDER[k])


def _round_up(v, m):
    return ((v + m - 1) // m) * m


# ----------------------------------------------------------------------------
# In-kernel helpers
# ----------------------------------------------------------------------------
def _ln2d(x, g, b):
    mu = jnp.mean(x, axis=-1, keepdims=True)
    var = jnp.mean(jnp.square(x - mu), axis=-1, keepdims=True)
    return (x - mu) * lax.rsqrt(var + EPS) * g + b


def _masked_ln2d(x, g, b, ch_mask, n_valid):
    # LayerNorm over the first n_valid channels of a zero-padded lane dim.
    xm = jnp.where(ch_mask, x, 0.0)
    mu = jnp.sum(xm, axis=-1, keepdims=True) / n_valid
    var = jnp.sum(jnp.where(ch_mask, jnp.square(x - mu), 0.0),
                  axis=-1, keepdims=True) / n_valid
    # g/b are zero on padded channels -> padded outputs are exactly 0
    return (x - mu) * lax.rsqrt(var + EPS) * g + b


# ----------------------------------------------------------------------------
# Fused encoder layer: spatial attention + temporal attention + feed-forward
# ----------------------------------------------------------------------------
def _layer_kernel(x_ref, spb_ref, tmb_ref,
                  g1s_ref, b1s_ref, wqs_ref, bqs_ref, wps_ref, bps_ref,
                  g1t_ref, b1t_ref, wqt_ref, bqt_ref, wpt_ref, bpt_ref,
                  g2_ref, b2_ref, w1_ref, fb1_ref, w2_ref, fb2_ref,
                  o_ref, tok_scr, slab_scr,
                  *, num_heads, vmp, d, dt, dhp):
    TP = x_ref.shape[1]
    dtp = x_ref.shape[2]
    n_tok = TP * vmp

    # ---- lane-dense slab -> per-frame token layout (TP, VMP, D) --------------
    # Done with VMP static lane-slice copies instead of a lane-splitting reshape.
    for j in range(vmp):
        tok_scr[:, j, :] = x_ref[0, :, j * d:(j + 1) * d]
    x_slab = x_ref[0]                                    # (TP, DtP) f32
    x2 = tok_scr[...].reshape(n_tok, d)                  # free (vmp % 8 == 0)

    # ---- spatial attention ----------------------------------------------------
    y = _ln2d(x2, g1s_ref[...], b1s_ref[...])
    qkv = jnp.dot(y.astype(jnp.bfloat16), wqs_ref[...],
                  preferred_element_type=jnp.float32) + bqs_ref[...]     # (n_tok, 3D)
    qkv = qkv.reshape(TP, vmp, 3 * d).astype(jnp.bfloat16)               # cast once
    dh = d // num_heads
    scale = dh ** (-0.5)
    spb = spb_ref[...]                                   # (1, 1, VMP) additive key bias
    heads = []
    for h in range(num_heads):
        q = qkv[:, :, h * dh:(h + 1) * dh]
        k = qkv[:, :, d + h * dh:d + (h + 1) * dh]
        v = qkv[:, :, 2 * d + h * dh:2 * d + (h + 1) * dh]
        s = jnp.einsum('fnd,fmd->fnm', q, k,
                       preferred_element_type=jnp.float32) * scale + spb
        m = jnp.max(s, axis=-1, keepdims=True)
        e = jnp.exp(s - m)
        p = e * pl.reciprocal(jnp.sum(e, axis=-1, keepdims=True), approx=True)
        heads.append(jnp.einsum('fnm,fmd->fnd', p.astype(jnp.bfloat16), v,
                                preferred_element_type=jnp.float32))
    o_sp = jnp.concatenate(heads, axis=-1)               # (TP, VMP, D)
    proj = jnp.dot(o_sp.reshape(n_tok, d).astype(jnp.bfloat16), wps_ref[...],
                   preferred_element_type=jnp.float32) + bps_ref[...]

    # ---- token layout -> lane-dense slab + spatial residual -------------------
    tok_scr[...] = proj.reshape(TP, vmp, d)
    for j in range(vmp):
        slab_scr[:, j * d:(j + 1) * d] = tok_scr[:, j, :]
    x_sp = x_slab + slab_scr[...]                        # (TP, DtP)

    # ---- temporal attention (channels padded Dt->DtP, heads padded dh->dhp) ---
    ch_mask = lax.broadcasted_iota(jnp.int32, (1, dtp), 1) < dt
    y1 = _masked_ln2d(x_sp, g1t_ref[...], b1t_ref[...], ch_mask, dt)
    qkv_t = (jnp.dot(y1.astype(jnp.bfloat16), wqt_ref[...],
                     preferred_element_type=jnp.float32)
             + bqt_ref[...]).astype(jnp.bfloat16)        # (TP, 3*H*dhp), cast once
    hd = num_heads * dhp
    scale_t = (dt // num_heads) ** (-0.5)
    tmb = tmb_ref[0]                                     # (1, TP) additive key bias
    outs = []
    for h in range(num_heads):
        q = qkv_t[:, h * dhp:(h + 1) * dhp]              # 128-lane aligned slices
        k = qkv_t[:, hd + h * dhp:hd + (h + 1) * dhp]
        v = qkv_t[:, 2 * hd + h * dhp:2 * hd + (h + 1) * dhp]
        s = jnp.einsum('nd,md->nm', q, k,
                       preferred_element_type=jnp.float32) * scale_t + tmb
        m = jnp.max(s, axis=-1, keepdims=True)
        e = jnp.exp(s - m)
        p = e * pl.reciprocal(jnp.sum(e, axis=-1, keepdims=True), approx=True)
        outs.append(jnp.dot(p.astype(jnp.bfloat16), v,
                            preferred_element_type=jnp.float32))
    o_t = jnp.concatenate(outs, axis=-1)                 # (TP, H*dhp), aligned concat
    proj_t = jnp.dot(o_t.astype(jnp.bfloat16), wpt_ref[...],
                     preferred_element_type=jnp.float32) + bpt_ref[...]
    x_tm = x_sp + proj_t

    # ---- feed-forward ----------------------------------------------------------
    y2 = _masked_ln2d(x_tm, g2_ref[...], b2_ref[...], ch_mask, dt)
    hdn = jnp.dot(y2.astype(jnp.bfloat16), w1_ref[...],
                  preferred_element_type=jnp.float32) + fb1_ref[...]
    hdn = jax.nn.gelu(hdn, approximate=False)
    f = jnp.dot(hdn.astype(jnp.bfloat16), w2_ref[...],
                preferred_element_type=jnp.float32) + fb2_ref[...]
    o_ref[0] = x_tm + f


def encoder_layer(x_slab, sp_bias, tm_bias, lw, num_heads, d, dt):
    B, TP, DtP = x_slab.shape
    vmp = DtP // d
    dhp = lw["dhp"]
    hfp = lw["w1"].shape[1]
    hdq = 3 * num_heads * dhp
    kernel = functools.partial(_layer_kernel, num_heads=num_heads, vmp=vmp,
                               d=d, dt=dt, dhp=dhp)

    def full(shape):
        return pl.BlockSpec(shape, lambda b, _s=shape: (0,) * len(_s))

    # One grid step = one sample (~2.3 MB bf16 weights + tiny activations), far
    # below the VMEM budget of every generation; grid length B >= 2 keeps both
    # v7x TensorCores busy.  For large B several samples could share one step.
    return pl.pallas_call(
        kernel,
        grid=(B,),
        out_shape=jax.ShapeDtypeStruct((B, TP, DtP), jnp.float32),
        in_specs=[
            pl.BlockSpec((1, TP, DtP), lambda b: (b, 0, 0)),       # activation slab
            pl.BlockSpec((1, 1, vmp), lambda b: (b, 0, 0)),        # spatial key bias
            pl.BlockSpec((1, 1, TP), lambda b: (b, 0, 0)),         # temporal key bias
            full((1, d)), full((1, d)),                            # LN1_sp
            full((d, 3 * d)), full((1, 3 * d)),                    # qkv_sp
            full((d, d)), full((1, d)),                            # proj_sp
            full((1, DtP)), full((1, DtP)),                        # LN1_tm
            full((DtP, hdq)), full((1, hdq)),                      # qkv_tm (padded)
            full((num_heads * dhp, DtP)), full((1, DtP)),          # proj_tm (padded)
            full((1, DtP)), full((1, DtP)),                        # LN2
            full((DtP, hfp)), full((1, hfp)),                      # fc1
            full((hfp, DtP)), full((1, DtP)),                      # fc2
        ],
        out_specs=pl.BlockSpec((1, TP, DtP), lambda b: (b, 0, 0)),
        scratch_shapes=[pltpu.VMEM((TP, vmp, d), jnp.float32),
                        pltpu.VMEM((TP, DtP), jnp.float32)],
        compiler_params=pltpu.CompilerParams(dimension_semantics=("parallel",)),
    )(x_slab, sp_bias, tm_bias,
      lw["g1s"], lw["b1s"], lw["wq_s"], lw["bq_s"], lw["wp_s"], lw["bp_s"],
      lw["g1t"], lw["b1t"], lw["wq_t"], lw["bq_t"], lw["wp_t"], lw["bp_t"],
      lw["g2"], lw["b2"], lw["w1"], lw["fb1"], lw["w2"], lw["fb2"])


# ----------------------------------------------------------------------------
# Row-wise kernels: joint embedding matmul and the final norm + MLP head
# ----------------------------------------------------------------------------
def _dense_kernel(x_ref, w_ref, b_ref, o_ref):
    o_ref[...] = jnp.dot(x_ref[...].astype(w_ref.dtype), w_ref[...],
                         preferred_element_type=jnp.float32) + b_ref[...]


def dense(x2d, w, b, tile_m=512):
    M, K = x2d.shape
    N = w.shape[1]
    tm = M if M <= tile_m else tile_m
    return pl.pallas_call(
        _dense_kernel,
        grid=(pl.cdiv(M, tm),),
        out_shape=jax.ShapeDtypeStruct((M, N), jnp.float32),
        in_specs=[pl.BlockSpec((tm, K), lambda i: (i, 0)),
                  pl.BlockSpec((K, N), lambda i: (0, 0)),
                  pl.BlockSpec((1, N), lambda i: (0, 0))],
        out_specs=pl.BlockSpec((tm, N), lambda i: (i, 0)),
        compiler_params=pltpu.CompilerParams(dimension_semantics=("parallel",)),
    )(x2d, w, b.reshape(1, N))


def _head_kernel(x_ref, gn_ref, bn_ref, w1_ref, b1_ref, g1_ref, be1_ref,
                 w2_ref, b2_ref, g2_ref, be2_ref, o_ref):
    # fused: final encoder LayerNorm + (Linear -> GELU -> LN -> Linear -> GELU -> LN)
    y = _ln2d(x_ref[...], gn_ref[...], bn_ref[...])
    h = jnp.dot(y.astype(jnp.bfloat16), w1_ref[...],
                preferred_element_type=jnp.float32) + b1_ref[...]
    h = jax.nn.gelu(h, approximate=False)
    h = _ln2d(h, g1_ref[...], be1_ref[...])
    h = jnp.dot(h.astype(jnp.bfloat16), w2_ref[...],
                preferred_element_type=jnp.float32) + b2_ref[...]
    h = jax.nn.gelu(h, approximate=False)
    o_ref[...] = _ln2d(h, g2_ref[...], be2_ref[...])


def mlp_head(x2d, norm_g, norm_b, mlp_params, tile_m=512):
    w1, b1, g1, be1, w2, b2, g2, be2 = mlp_params
    M, Dm = x2d.shape
    tm = M if M <= tile_m else tile_m
    vec = pl.BlockSpec((1, Dm), lambda i: (0, 0))
    return pl.pallas_call(
        _head_kernel,
        grid=(pl.cdiv(M, tm),),
        out_shape=jax.ShapeDtypeStruct((M, Dm), jnp.float32),
        in_specs=[pl.BlockSpec((tm, Dm), lambda i: (i, 0)),
                  vec, vec,
                  pl.BlockSpec((Dm, Dm), lambda i: (0, 0)), vec, vec, vec,
                  pl.BlockSpec((Dm, Dm), lambda i: (0, 0)), vec, vec, vec],
        out_specs=pl.BlockSpec((tm, Dm), lambda i: (i, 0)),
        compiler_params=pltpu.CompilerParams(dimension_semantics=("parallel",)),
    )(x2d, norm_g.reshape(1, Dm), norm_b.reshape(1, Dm),
      w1, b1.reshape(1, Dm), g1.reshape(1, Dm), be1.reshape(1, Dm),
      w2, b2.reshape(1, Dm), g2.reshape(1, Dm), be2.reshape(1, Dm))


# ----------------------------------------------------------------------------
# Padded / head-aligned weight preparation (done once, outside the kernels)
# ----------------------------------------------------------------------------
def _prep_layer_weights(blk, d, dt, dtp, num_heads):
    dh = dt // num_heads
    dhp = _round_up(dh, 128)
    wq_t, bq_t, wp_t, bp_t = blk["attn_tm"]
    w1, b1, w2, b2 = blk["ff"]
    hf = w1.shape[1]
    hfp = _round_up(hf, 128)

    # temporal qkv: head-align columns to dhp, zero-pad the 16 padded channel rows
    wq_pad = jnp.zeros((dtp, 3 * num_heads * dhp), jnp.float32)
    bq_pad = jnp.zeros((3 * num_heads * dhp,), jnp.float32)
    for s in range(3):
        for h in range(num_heads):
            dst = s * num_heads * dhp + h * dhp
            src = s * dt + h * dh
            wq_pad = wq_pad.at[:dt, dst:dst + dh].set(wq_t[:, src:src + dh])
            bq_pad = bq_pad.at[dst:dst + dh].set(bq_t[src:src + dh])

    # temporal proj: head-align input rows, zero-pad output channel columns
    wp_pad = jnp.zeros((num_heads * dhp, dtp), jnp.float32)
    for h in range(num_heads):
        wp_pad = wp_pad.at[h * dhp:h * dhp + dh, :dt].set(wp_t[h * dh:(h + 1) * dh, :])
    bp_pad = jnp.zeros((dtp,), jnp.float32).at[:dt].set(bp_t)

    # FFN: zero-pad in/out channels and round the hidden dim up to a lane multiple
    w1_pad = jnp.pad(w1, ((0, dtp - dt), (0, hfp - hf)))
    b1_pad = jnp.pad(b1, (0, hfp - hf))
    w2_pad = jnp.pad(w2, ((0, hfp - hf), (0, dtp - dt)))
    b2_pad = jnp.pad(b2, (0, dtp - dt))

    # temporal LayerNorm params: zero-pad so padded channels come out exactly 0
    g1t = jnp.pad(blk["norm1_tm"][0], (0, dtp - dt))
    b1t = jnp.pad(blk["norm1_tm"][1], (0, dtp - dt))
    g2 = jnp.pad(blk["norm2"][0], (0, dtp - dt))
    b2n = jnp.pad(blk["norm2"][1], (0, dtp - dt))

    wq_s, bq_s, wp_s, bp_s = blk["attn_sp"]
    return dict(
        dhp=dhp,
        g1s=blk["norm1_sp"][0].reshape(1, d), b1s=blk["norm1_sp"][1].reshape(1, d),
        wq_s=wq_s.astype(jnp.bfloat16), bq_s=bq_s.reshape(1, 3 * d),
        wp_s=wp_s.astype(jnp.bfloat16), bp_s=bp_s.reshape(1, d),
        g1t=g1t.reshape(1, dtp), b1t=b1t.reshape(1, dtp),
        wq_t=wq_pad.astype(jnp.bfloat16), bq_t=bq_pad.reshape(1, -1),
        wp_t=wp_pad.astype(jnp.bfloat16), bp_t=bp_pad.reshape(1, dtp),
        g2=g2.reshape(1, dtp), b2=b2n.reshape(1, dtp),
        w1=w1_pad.astype(jnp.bfloat16), fb1=b1_pad.reshape(1, hfp),
        w2=w2_pad.astype(jnp.bfloat16), fb2=b2_pad.reshape(1, dtp),
    )


# ----------------------------------------------------------------------------
# Parameters (deterministic, shapes follow the module __init__)
# ----------------------------------------------------------------------------
def make_params(key, C_in, D, VM, T, depth, ff_expand):
    Dt = D * VM
    Hf = int(Dt * ff_expand)
    key_iter = iter(jax.random.split(key, 128))

    def lin(fan_in, fan_out, bias=True):
        k1, k2 = next(key_iter), next(key_iter)
        bound = 1.0 / np.sqrt(fan_in)
        w = jax.random.uniform(k1, (fan_in, fan_out), jnp.float32, -bound, bound)
        b = (jax.random.uniform(k2, (fan_out,), jnp.float32, -bound, bound)
             if bias else jnp.zeros((fan_out,), jnp.float32))
        return w, b

    def ln_p(dim):
        return jnp.ones((dim,), jnp.float32), jnp.zeros((dim,), jnp.float32)

    params = {
        "emb_arms": lin(C_in, D),
        "emb_legs": lin(C_in, D),
        "emb_spine": lin(C_in, D),
        "emb_global": lin(C_in, D),
        "tm_fuse_token": jax.random.uniform(next(key_iter), (1, 1, VM, D), jnp.float32),
        "positional_emb": jnp.zeros((1, T + 1, VM, D), jnp.float32),  # zeros per __init__
        "norm": ln_p(Dt),
    }

    blocks = []
    for _ in range(depth):
        wq_sp, _ = lin(D, 3 * D)                      # qkv_bias = False
        bq_sp = jnp.zeros((3 * D,), jnp.float32)
        wp_sp, bp_sp = lin(D, D)
        wq_tm, _ = lin(Dt, 3 * Dt)
        bq_tm = jnp.zeros((3 * Dt,), jnp.float32)
        wp_tm, bp_tm = lin(Dt, Dt)
        w1, b1 = lin(Dt, Hf)
        w2, b2 = lin(Hf, Dt)
        blocks.append({
            "norm1_sp": ln_p(D),
            "attn_sp": (wq_sp, bq_sp, wp_sp, bp_sp),
            "norm1_tm": ln_p(Dt),
            "attn_tm": (wq_tm, bq_tm, wp_tm, bp_tm),
            "norm2": ln_p(Dt),
            "ff": (w1, b1, w2, b2),
        })
    params["blocks"] = blocks

    mw1, mb1 = lin(Dt, Dt)
    mg1, mbe1 = ln_p(Dt)
    mw2, mb2 = lin(Dt, Dt)
    mg2, mbe2 = ln_p(Dt)
    params["mlp"] = (mw1, mb1, mg1, mbe1, mw2, mb2, mg2, mbe2)
    return params


# ----------------------------------------------------------------------------
# Full forward pass
# ----------------------------------------------------------------------------
def st_transformer_forward(x, params, num_heads):
    B, C_in, T, VM = x.shape
    D = params["emb_global"][0].shape[1]
    assert VM == len(NEW_ORDER), "joint indices are hard-coded for max_joint == 23"
    assert D % num_heads == 0 and (VM * D) % num_heads == 0
    Dt = VM * D
    VMP = _round_up(VM, 8)       # joints padded (padded joint key-masked, stripped)
    DtP = VMP * D                # padded temporal width (384 for D=16)
    TP = _round_up(T + 1, 8)     # frames padded (padded frames key-masked, dropped)

    x = x.astype(jnp.float32)

    # --- masks -----------------------------------------------------------------
    t_mask = jnp.all(x[:, :, :, 0] != 99.9, axis=1)          # (B, T)  valid frames
    s_mask = jnp.all(x[:, :, 0, :] != 99.9, axis=1)          # (B, VM) valid joints
    # TODO(synk): joint_num_cls drives a data-dependent joint reshuffle; like the
    # reference `.item()` it needs a host scalar sync and uses sample 0 only.
    joint_num_cls = int(jax.device_get(jnp.sum(s_mask[0].astype(jnp.int32))))
    if not (joint_num_cls == VM and bool(jax.device_get(jnp.all(s_mask)))):
        x = jnp.concatenate([x[..., :joint_num_cls - 1],
                             x[..., joint_num_cls:],
                             x[..., joint_num_cls - 1:joint_num_cls]], axis=-1)
        s_mask = s_mask.at[:, joint_num_cls - 1].set(False).at[:, VM - 1].set(True)

    # Per-sample additive key biases (0 keep / NEG masked).  The spatial bias is
    # broadcast per sample over frames (intended semantics; identical to the
    # reference's repeat() indexing whenever all samples share the joint mask).
    sp_bias = jnp.where(s_mask, 0.0, NEG).astype(jnp.float32)           # (B, VM)
    sp_bias = jnp.pad(sp_bias, ((0, 0), (0, VMP - VM)), constant_values=NEG)
    sp_bias = sp_bias.reshape(B, 1, VMP)

    t_full = jnp.concatenate([t_mask, jnp.ones((B, 1), dtype=bool)], axis=1)
    tm_bias = jnp.where(t_full, 0.0, NEG).astype(jnp.float32)           # (B, T+1)
    tm_bias = jnp.pad(tm_bias, ((0, 0), (0, TP - (T + 1))), constant_values=NEG)
    tm_bias = tm_bias.reshape(B, 1, TP)

    # --- fused per-group joint embedding: one block-diagonal matmul -------------
    g_ws, g_bs = [], []
    for name, idx in (("emb_arms", IDX_ARMS), ("emb_legs", IDX_LEGS),
                      ("emb_spine", IDX_SPINE), ("emb_global", IDX_GLOBAL)):
        w, b = params[name]
        g_ws += [w] * len(idx)
        g_bs += [b] * len(idx)
    w_big = jax.scipy.linalg.block_diag(*g_ws).astype(jnp.bfloat16)     # (VM*Cin, VM*D)
    b_big = jnp.concatenate(g_bs)

    xg = jnp.transpose(x[:, :, :, jnp.asarray(NEW_ORDER)], (0, 2, 3, 1))  # (B,T,VM,Cin)
    xe = dense(xg.reshape(B * T, VM * C_in), w_big, b_big).reshape(B, T, VM, D)

    fuse = jnp.broadcast_to(params["tm_fuse_token"], (B, 1, VM, D))
    xe = jnp.concatenate([xe, fuse], axis=1)                  # (B, T+1, VM, D)
    xe = xe + 2.0 * params["positional_emb"]                  # pos emb added twice
    xe = xe[:, :, jnp.asarray(INV_ORDER), :]                  # undo group ordering
    # persistent joint/frame padding, kept through all encoder layers
    xe = jnp.pad(xe, ((0, 0), (0, TP - (T + 1)), (0, VMP - VM), (0, 0)))
    x_slab = xe.reshape(B, TP, DtP)                           # lane-dense activation

    layer_weights = [_prep_layer_weights(blk, D, Dt, DtP, num_heads)
                     for blk in params["blocks"]]

    # --- transformer encoder: one fused pallas_call per layer --------------------
    # TODO(synk): all `depth` layers could run in a single pallas_call with the
    # activation resident in VMEM (grid=(depth, B)); kept per-layer for clarity.
    for lw in layer_weights:
        x_slab = encoder_layer(x_slab, sp_bias, tm_bias, lw, num_heads, D, Dt)

    # --- final norm + MLP head (fused, per-frame pointwise) ----------------------
    # only the T real frames are kept (cls + padded frames / padded joint dropped)
    x_body = x_slab.reshape(B, TP, VMP, D)[:, :T, :VM, :].reshape(B * T, Dt)
    mw1, mb1, mg1, mbe1, mw2, mb2, mg2, mbe2 = params["mlp"]
    head_params = (mw1.astype(jnp.bfloat16), mb1, mg1, mbe1,
                   mw2.astype(jnp.bfloat16), mb2, mg2, mbe2)
    xf = mlp_head(x_body, params["norm"][0], params["norm"][1], head_params)
    xm = xf.reshape(B, T, VM, D)

    # re-insert the cls joint at its original slot (identity when no reshuffle)
    jnc = joint_num_cls
    pieces = [xm[:, :, :jnc - 1, :], xm[:, :, VM - 1:VM, :], xm[:, :, jnc - 1:VM - 1, :]]
    xm = jnp.concatenate([p for p in pieces if p.shape[2] > 0], axis=2)
    xm = xm.reshape(B, T, Dt)

    # --- data-dependent frame filtering (ragged per-sample outputs) --------------
    # TODO(synk): ragged per-sample output lengths cannot be expressed inside a
    # Pallas kernel; the gather stays on host like in the reference.
    mask_rows = np.asarray(jax.device_get(t_mask))            # (B, T) bool
    outputs = []
    for i in range(B):
        valid = np.nonzero(mask_rows[i])[0]
        outputs.append(xm[i, jnp.asarray(valid, dtype=jnp.int32), :])
    return outputs


# ----------------------------------------------------------------------------
if __name__ == "__main__":
    B, C_in, T, VM = 2, 3, 8, 23        # max_joint must be 23 (hard-coded indices)
    D = 16                               # dim_joint_emb
    depth = 2
    num_heads = 4                        # divides D and D*VM
    ff_expand = 1.0

    key = jax.random.PRNGKey(0)
    kx, kp = jax.random.split(key)
    x = jax.random.normal(kx, (B, C_in, T, VM), dtype=jnp.float32)
    params = make_params(kp, C_in, D, VM, T, depth, ff_expand)

    outs = st_transformer_forward(x, params, num_heads)
    for o in outs:
        jax.block_until_ready(o)

    assert all(o.shape[1] == VM * D for o in outs)
    assert all(bool(jnp.all(jnp.isfinite(o))) for o in outs)
    print("KERNEL_OK")
</pallas_src>

<mosaic_0001>
module attributes {stable_mosaic.version = 11 : i64} {
  func.func @_dense_kernel(%arg0: i32, %arg1: memref<16x69xf32, #tpu.memory_space<vmem>>, %arg2: memref<69x368xbf16, #tpu.memory_space<vmem>>, %arg3: memref<1x368xf32, #tpu.memory_space<vmem>>, %arg4: memref<16x368xf32, #tpu.memory_space<vmem>>) attributes {dimension_semantics = [#tpu.dimension_semantics<parallel>], iteration_bounds = array<i64: 1>, scalar_prefetch = 0 : i64, scratch_operands = 0 : i64, tpu.core_type = #tpu.core_type<tc>, window_params = [{transform_indices = @transform_0, window_bounds = array<i64: 16, 69>}, {pipeline_mode = #tpu.pipeline_mode<synchronous>, transform_indices = @transform_1, window_bounds = array<i64: 69, 368>}, {pipeline_mode = #tpu.pipeline_mode<synchronous>, transform_indices = @transform_2, window_bounds = array<i64: 1, 368>}, {transform_indices = @transform_3, window_bounds = array<i64: 16, 368>}]} {
    %c0 = arith.constant 0 : index
    %c0_0 = arith.constant 0 : index
    %0 = vector.load %arg1[%c0, %c0_0] : memref<16x69xf32, #tpu.memory_space<vmem>>, vector<16x69xf32>
    %1 = arith.truncf %0 : vector<16x69xf32> to vector<16x69xbf16>
    %c0_1 = arith.constant 0 : index
    %c0_2 = arith.constant 0 : index
    %2 = vector.load %arg2[%c0_1, %c0_2] : memref<69x368xbf16, #tpu.memory_space<vmem>>, vector<69x368xbf16>
    %cst = arith.constant dense<0.000000e+00> : vector<16x368xf32>
    %3 = tpu.matmul %1, %2, %cst {dimension_numbers = #tpu.dot_dimension_numbers<[1], [0], [0], [1], [0, 0, 1, 1], [], []>} : vector<16x69xbf16>, vector<69x368xbf16>, vector<16x368xf32> -> vector<16x368xf32>
    %c0_3 = arith.constant 0 : index
    %c0_4 = arith.constant 0 : index
    %4 = vector.load %arg3[%c0_3, %c0_4] : memref<1x368xf32, #tpu.memory_space<vmem>>, vector<1x368xf32>
    %5 = vector.broadcast %4 : vector<1x368xf32> to vector<16x368xf32>
    %6 = arith.addf %3, %5 : vector<16x368xf32>
    %c0_5 = arith.constant 0 : index
    %c0_6 = arith.constant 0 : index
    %7 = vector.load %arg4[%c0_5, %c0_6] : memref<16x368xf32, #tpu.memory_space<vmem>>, vector<16x368xf32>
    tpu.vector_store %arg4[%c0_5, %c0_6], %6 {strides = array<i32>} : memref<16x368xf32, #tpu.memory_space<vmem>>, vector<16x368xf32>,
    return
  }
  func.func @transform_0(%arg0: i32) -> (i32, i32) {
    %c0_i32 = arith.constant 0 : i32
    %c0_i32_0 = arith.constant 0 : i32
    return %arg0, %c0_i32 : i32, i32
  }
  func.func @transform_1(%arg0: i32) -> (i32, i32) {
    %c0_i32 = arith.constant 0 : i32
    %c0_i32_0 = arith.constant 0 : i32
    %c0_i32_1 = arith.constant 0 : i32
    return %c0_i32, %c0_i32_0 : i32, i32
  }
  func.func @transform_2(%arg0: i32) -> (i32, i32) {
    %c0_i32 = arith.constant 0 : i32
    %c0_i32_0 = arith.constant 0 : i32
    %c0_i32_1 = arith.constant 0 : i32
    return %c0_i32, %c0_i32_0 : i32, i32
  }
  func.func @transform_3(%arg0: i32) -> (i32, i32) {
    %c0_i32 = arith.constant 0 : i32
    %c0_i32_0 = arith.constant 0 : i32
    return %arg0, %c0_i32 : i32, i32
  }
}

</mosaic_0001>

<llo_original>
// kernel: tpu_custom_call.1
$region0: #{tpu_custom_call.1}
  #allocation0 [shape = 'u32[]', space=smem, size = 0x4, offset = 0x4, fixed_abs, tag = 'smem constant byte address 0x4 - core index']
  #allocation1 [shape = 'u32[144,128]{1,0:T(1,128)}', space=vmem, size = 0x12000, scoped, tag = 'internal scratch']
  %s0 = inlined_call_operand.hbm [shape: f32[16,69], index: 0, kind: input, shape index: {}]
  %s1 = inlined_call_operand.hbm [shape: bf16[69,368], index: 1, kind: input, shape index: {}]
  %s2 = inlined_call_operand.vmem [shape: f32[1,368], index: 2, kind: input, shape index: {}]
  %s3 = inlined_call_operand.hbm [shape: f32[16,368], index: 3, kind: output, shape index: {}]
  %s4 = sld [smem:[#allocation0]]
  $region30: #{tpu_custom_call.1} parent=0
    _
  %s6 = ssub.s32 1, %s4
  %s7 = scalar_select 0, %s6, %s4
  $region1: #{tpu_custom_call.1} parent=0
    #allocation2 [shape = 'u8[8192]{0}', space=vmem, size = 0x2000, scoped, tag = 'input window, operand 0, single buffered']
    #allocation3 [shape = 's32[1]{0}', space=sflag, size = 0x4, scoped, tag = 'scoped memory for tpu_custom_call.1']
    #allocation4 [shape = 's32[1]{0}', space=sflag, size = 0x4, scoped, tag = 'scoped memory for tpu_custom_call.1']
    #allocation5 [shape = 'u8[55296]{0}', space=vmem, size = 0xd800, scoped, tag = 'input window, operand 1, single buffered']
    #allocation6 [shape = 's32[1]{0}', space=sflag, size = 0x4, scoped, tag = 'scoped memory for tpu_custom_call.1']
    #allocation7 [shape = 'u8[24576]{0}', space=vmem, size = 0x6000, scoped, tag = 'output window, operand 0, single buffered']
    %8 = vsyncpa [#allocation3], 0
    %9 = vsyncpa [#allocation6], 0
    %10 = vsyncpa [#allocation4], 0
    // Predicated region
    $region2: #{tpu_custom_call.1} parent=1 // pred_check
      _
    $region3: #{tpu_custom_call.1} parent=1 // pred_check_branch
      %12 = sbr.rel (0) target = $region5
    $region4: #{tpu_custom_call.1} parent=1 // pred_region
      %s14 = ssub.s32 256, 256
      %15 = vsyncadd [#allocation3], %s14
      %s16 = sshll.u32 [#allocation2], 4
      %s17 = int_to_ptr.vmem [resolvable:$true] %s16
      %22 = dma.hbm_to_vmem [thread:$0]  %s0, 256, %s17, [#allocation3], 128, 128, 8
    $region5: #{tpu_custom_call.1} parent=1 // pred_fallthru
      _
    // Predicated region
    $region6: #{tpu_custom_call.1} parent=1 // pred_check
      _
    $region7: #{tpu_custom_call.1} parent=1 // pred_check_branch
      %24 = sbr.rel (0) target = $region9
    $region8: #{tpu_custom_call.1} parent=1 // pred_region
      %s26 = ssub.s32 1728, 1728
      %27 = vsyncadd [#allocation6], %s26
      %s28 = sshll.u32 [#allocation5], 4
      %s29 = int_to_ptr.vmem [resolvable:$true] %s28
      %34 = dma.hbm_to_vmem [thread:$0]  %s1, 1728, %s29, [#allocation6], 192, 192, 12
    $region9: #{tpu_custom_call.1} parent=1 // pred_fallthru
      _
    // Predicated region
    $region10: #{tpu_custom_call.1} parent=1 // pred_check
      _
    $region11: #{tpu_custom_call.1} parent=1 // pred_check_branch
      %36 = sbr.rel (0) target = $region13
    $region12: #{tpu_custom_call.1} parent=1 // pred_region
      _
    $region13: #{tpu_custom_call.1} parent=1 // pred_fallthru
      _
    // Predicated region
    $region14: #{tpu_custom_call.1} parent=1 // pred_check
      _
    $region15: #{tpu_custom_call.1} parent=1 // pred_check_branch
      %38 = sbr.rel (0) target = $region17
    $region16: #{tpu_custom_call.1} parent=1 // pred_region
      %39 = dma.done [#allocation3], 256
    $region17: #{tpu_custom_call.1} parent=1 // pred_fallthru
      _
    // Predicated region
    $region18: #{tpu_custom_call.1} parent=1 // pred_check
      _
    $region19: #{tpu_custom_call.1} parent=1 // pred_check_branch
      %41 = sbr.rel (0) target = $region21
    $region20: #{tpu_custom_call.1} parent=1 // pred_region
      %42 = dma.done [#allocation6], 1728
    $region21: #{tpu_custom_call.1} parent=1 // pred_fallthru
      _
    %v44 = vld [vmem:[#allocation2] sm:$0xff]
    %v45 = vld [vmem:[#allocation2 + $0x8] sm:$0xff]
    %v46 = vpack.c.bf16 %v45, %v44
    %v47 = vld [vmem:[#allocation5] sm:$0xff]
    %v48 = vld [vmem:[#allocation5 + $0x8] sm:$0xf]
    %v49 = vld [vmem:[#allocation5 + $0xc] sm:$0xff]
    %v50 = vld [vmem:[#allocation5 + $0x14] sm:$0xf]
    %v51 = vld [vmem:[#allocation5 + $0x18] sm:$0xff]
    %v52 = vld [vmem:[#allocation5 + $0x20] sm:$0xf]
    %v53 = vld [vmem:[#allocation5 + $0x24] sm:$0xff]
    %v54 = vld [vmem:[#allocation5 + $0x2c] sm:$0xf]
    %v55 = vld [vmem:[#allocation5 + $0x30] sm:$0xff]
    %v56 = vld [vmem:[#allocation5 + $0x38] sm:$0xf]
    %v57 = vld [vmem:[#allocation5 + $0x3c] sm:$0xff]
    %v58 = vld [vmem:[#allocation5 + $0x44] sm:$0xf]
    %v59 = vld [vmem:[#allocation5 + $0x48] sm:$0xff]
    %v60 = vld [vmem:[#allocation5 + $0x50] sm:$0xf]
    %v61 = vld [vmem:[#allocation5 + $0x54] sm:$0xff]
    %v62 = vld [vmem:[#allocation5 + $0x5c] sm:$0xf]
    %v63 = vld [vmem:[#allocation5 + $0x60] sm:$0x77]
    %v64 = vld [vmem:[#allocation5 + $0x68] sm:$0x7]
    %v65 = vld [vmem:[%s2] sm:$0x7]
    %v67 = vlaneseq
    %v68 = vshrl.u32 %v67, 7
    %v69 = vsub.s32 0, %v68
    %v70 = vrot.slane %v65, %v69
    %v71 = vlaneseq
    %v72 = vshrl.u32 %v71, 7
    %v73 = vsub.s32 1, %v72
    %v74 = vrot.slane %v65, %v73
    %v75 = vlaneseq
    %v76 = vshrl.u32 %v75, 7
    %v77 = vsub.s32 2, %v76
    %v78 = vrot.slane %v65, %v77
    %v100 = vunpack.c.l.b16 %v47
    %v101 = vunpack.c.h.b16 %v47
    %v102 = vunpack.c.l.b16 %v48
    %v103 = vunpack.c.l.b16 %v49
    %v104 = vunpack.c.h.b16 %v49
    %v105 = vunpack.c.l.b16 %v50
    %v106 = vunpack.c.l.b16 %v51
    %v107 = vunpack.c.h.b16 %v51
    %v108 = vunpack.c.l.b16 %v52
    %v109 = vunpack.c.l.b16 %v53
    %v110 = vunpack.c.h.b16 %v53
    %v111 = vunpack.c.l.b16 %v54
    %v112 = vunpack.c.l.b16 %v55
    %v113 = vunpack.c.h.b16 %v55
    %v114 = vunpack.c.l.b16 %v56
    %v115 = vunpack.c.l.b16 %v57
    %v116 = vunpack.c.h.b16 %v57
    %v117 = vunpack.c.l.b16 %v58
    %v118 = vunpack.c.l.b16 %v59
    %v119 = vunpack.c.h.b16 %v59
    %v120 = vunpack.c.l.b16 %v60
    %v121 = vunpack.c.l.b16 %v61
    %v122 = vunpack.c.h.b16 %v61
    %v123 = vunpack.c.l.b16 %v62
    %v124 = vunpack.c.l.b16 %v63
    %v125 = vunpack.c.h.b16 %v63
    %v126 = vunpack.c.l.b16 %v64
    %v127 = vpack.c.b16 %v103, %v100
    %v128 = vpack.c.b16 %v104, %v101
    %v129 = vpack.c.b16 %v105, %v102
    %v130 = vpack.c.b16 %v109, %v106
    %v131 = vpack.c.b16 %v110, %v107
    %v132 = vpack.c.b16 %v111, %v108
    %v133 = vpack.c.b16 %v115, %v112
    %v134 = vpack.c.b16 %v116, %v113
    %v135 = vpack.c.b16 %v117, %v114
    %v136 = vpack.c.b16 %v121, %v118
    %v137 = vpack.c.b16 %v122, %v119
    %v138 = vpack.c.b16 %v123, %v120
    %v139 = vpack.c.b16 %v124, %v124
    %v140 = vpack.c.b16 %v125, %v125
    %v141 = vpack.c.b16 %v126, %v126
    %vm154 = vcmask 564224
    %v156 = vsel %vm154, %v46, 0
    %vm158 = vcmask 1041408
    %vm159 = vcmask 1042432
    %v160 = vsel %vm158, 4294967295, 65535
    %v161 = vsel %vm159, %v160, 0
    %v163 = vand.u32 %v139, %v161
    %v166 = vand.u32 %v140, %v161
    %v169 = vand.u32 %v141, %v161
    %171 = vmatprep.subr.bf16.mxu0 %v128
    %172 = vmatpush1.bf16.msra.mxu0 %v127
    %173 = vmatprep.subr.bf16.mxu0 %v131
    %174 = vmatpush1.bf16.msra.mxu0 %v130
    %175 = vmatprep.subr.bf16.mxu0 %v134
    %176 = vmatpush1.bf16.msra.mxu0 %v133
    %177 = vmatprep.subr.bf16.mxu0 %v137
    %178 = vmatpush1.bf16.msra.mxu0 %v136
    %179 = vmatprep.subr.bf16.mxu0 %v166
    %180 = vmatpush1.bf16.msra.mxu0 %v163
    %181 = vmatprep.subr.bf16.mxu0 0
    %182 = vmatpush1.bf16.msra.mxu0 0
    %183 = vmatprep.subr.bf16.mxu0 0
    %184 = vmatpush1.bf16.msra.mxu0 0
    %185 = vmatprep.subr.bf16.mxu0 0
    %186 = vmatpush1.bf16.msra.mxu0 0
    %187 = vmatprep.subr.bf16.mxu0 0
    %188 = vmatpush1.bf16.msra.mxu0 0
    %189 = vmatprep.subr.bf16.mxu0 0
    %190 = vmatpush1.bf16.msra.mxu0 0
    %191 = vmatprep.subr.bf16.mxu0 0
    %192 = vmatpush1.bf16.msra.mxu0 0
    %193 = vmatprep.subr.bf16.mxu0 0
    %194 = vmatpush1.bf16.msra.mxu0 0
    %195 = vmatprep.subr.bf16.mxu0 0
    %196 = vmatpush1.bf16.msra.mxu0 0
    %197 = vmatprep.subr.bf16.mxu0 0
    %198 = vmatpush1.bf16.msra.mxu0 0
    %199 = vmatprep.subr.bf16.mxu0 0
    %200 = vmatpush1.bf16.msra.mxu0 0
    %201 = vmatprep.subr.bf16.mxu0 0
    %202 = vmatpush1.bf16.msra.mxu0 0
    %203 = vmatprep.mubr.bf16.mxu0 0
    %204 = vmatmul.mubr.bf16.gmra.mrb[0].mxu0 %v156
    %v205 = vpop.f32.mrb[0].mxu0
    %v206 = vadd.f32 %v70, %v205
    %v207 = vpop.f32.mrb[0].mxu0
    %v208 = vadd.f32 %v74, %v207
    %v209 = vpop.f32.mrb[0].mxu0
    %v210 = vadd.f32 %v70, %v209
    %v211 = vpop.f32.mrb[0].mxu0
    %v212 = vadd.f32 %v74, %v211
    %213 = vdwg.mxu0
    %214 = vmatprep.subr.bf16.mxu0 0
    %215 = vmatpush1.bf16.msra.mxu0 %v129
    %216 = vmatprep.subr.bf16.mxu0 0
    %217 = vmatpush1.bf16.msra.mxu0 %v132
    %218 = vmatprep.subr.bf16.mxu0 0
    %219 = vmatpush1.bf16.msra.mxu0 %v135
    %220 = vmatprep.subr.bf16.mxu0 0
    %221 = vmatpush1.bf16.msra.mxu0 %v138
    %222 = vmatprep.subr.bf16.mxu0 0
    %223 = vmatpush1.bf16.msra.mxu0 %v169
    %224 = vmatprep.subr.bf16.mxu0 0
    %225 = vmatpush1.bf16.msra.mxu0 0
    %226 = vmatprep.subr.bf16.mxu0 0
    %227 = vmatpush1.bf16.msra.mxu0 0
    %228 = vmatprep.subr.bf16.mxu0 0
    %229 = vmatpush1.bf16.msra.mxu0 0
    %230 = vmatprep.subr.bf16.mxu0 0
    %231 = vmatpush1.bf16.msra.mxu0 0
    %232 = vmatprep.subr.bf16.mxu0 0
    %233 = vmatpush1.bf16.msra.mxu0 0
    %234 = vmatprep.subr.bf16.mxu0 0
    %235 = vmatpush1.bf16.msra.mxu0 0
    %236 = vmatprep.subr.bf16.mxu0 0
    %237 = vmatpush1.bf16.msra.mxu0 0
    %238 = vmatprep.subr.bf16.mxu0 0
    %239 = vmatpush1.bf16.msra.mxu0 0
    %240 = vmatprep.subr.bf16.mxu0 0
    %241 = vmatpush1.bf16.msra.mxu0 0
    %242 = vmatprep.subr.bf16.mxu0 0
    %243 = vmatpush1.bf16.msra.mxu0 0
    %244 = vmatprep.subr.bf16.mxu0 0
    %245 = vmatpush1.bf16.msra.mxu0 0
    %246 = vmatprep.mubr.bf16.mxu0 0
    %247 = vmatmul.mubr.bf16.gmra.mrb[0].mxu0 %v156
    %v248 = vpop.f32.mrb[0].mxu0
    %v249 = vadd.f32 %v78, %v248
    %v250 = vpop.f32.mrb[0].mxu0
    %v251 = vpop.f32.mrb[0].mxu0
    %v252 = vadd.f32 %v78, %v251
    %v253 = vpop.f32.mrb[0].mxu0
    %254 = vdwg.mxu0
    %255 = vst [vmem:[#allocation7] sm:$0xff] %v206
    %256 = vst [vmem:[#allocation7 + $0x8] sm:$0xff] %v208
    %vm257 = vcmask 916480
    %258 = vst.msk [vmem:[#allocation7 + $0x10] sm:$0xff] %vm257, %v249
    %259 = vst [vmem:[#allocation7 + $0x18] sm:$0xff] %v210
    %260 = vst [vmem:[#allocation7 + $0x20] sm:$0xff] %v212
    %261 = vst.msk [vmem:[#allocation7 + $0x28] sm:$0xff] %vm257, %v252
    // Predicated region
    $region22: #{tpu_custom_call.1} parent=1 // pred_check
      _
    $region23: #{tpu_custom_call.1} parent=1 // pred_check_branch
      %263 = sbr.rel (0) target = $region25
    $region24: #{tpu_custom_call.1} parent=1 // pred_region
      %s265 = ssub.s32 768, 768
      %266 = vsyncadd [#allocation4], %s265
      %s267 = sshll.u32 [#allocation7], 4
      %s268 = int_to_ptr.vmem [resolvable:$true] %s267
      %273 = dma.vmem_to_hbm [thread:$0]  %s268, 768, %s3, [#allocation4], 384, 384, 24
    $region25: #{tpu_custom_call.1} parent=1 // pred_fallthru
      _
    // Predicated region
    $region26: #{tpu_custom_call.1} parent=1 // pred_check
      _
    $region27: #{tpu_custom_call.1} parent=1 // pred_check_branch
      %275 = sbr.rel (0) target = $region29
    $region28: #{tpu_custom_call.1} parent=1 // pred_region
      %276 = dma.done [#allocation4], 768
    $region29: #{tpu_custom_call.1} parent=1 // pred_fallthru
      _
    %277 = vsyncpa [#allocation3], 1
    %278 = vsyncpa [#allocation6], 1
    %279 = vsyncpa [#allocation4], 1

</llo_original>
